<compile_context>
chip_gen: v5e
topology: v5e:2x2
jax: 0.10.0
libtpu: 0.0.40
codegen_flags: <defaults>
</compile_context>

<pallas_src>
import jax
import jax.numpy as jnp
from jax.experimental import pallas as pl
from jax.experimental.pallas import tpu as pltpu

# ----------------------------- configuration -------------------------------
B = 2            # batch
C = 32           # channels
L = 128          # sequence length (keep a multiple of 128 for lane-dense I/O)
REDUCTION = 16
CR = C // REDUCTION          # hidden channels of the MLP (= 2)
K = 9                        # spatial conv kernel size
PAD = K // 2                 # = 4


# ------------------------------- kernel ------------------------------------
def cbam_kernel(x_ref, w1k_ref, w2k_ref, wc_ref, o_ref):
    """Whole batch block per grid step.

    x_ref  : (Bb, C, L)  VMEM
    w1k_ref: (CR, C, 1)  VMEM  -- Conv1d(C, C//r, 1) weight, rows = hidden units
    w2k_ref: (CR, C, 1)  VMEM  -- Conv1d(C//r, C, 1) weight, transposed columns
    wc_ref : (2, K)      SMEM  -- Conv1d(2, 1, K) weight (squeezed)
    o_ref  : (Bb, C, L)  VMEM
    """
    x = x_ref[...].astype(jnp.float32)                 # (Bb, C, L)
    bb, c, l = x.shape
    cr = w1k_ref.shape[0]

    # ------------- channel attention (fused max/avg MLP pass, VPU) ----------
    mx = jnp.max(x, axis=-1, keepdims=True)            # AdaptiveMaxPool1d(1): (Bb, C, 1)
    av = jnp.mean(x, axis=-1, keepdims=True)           # AdaptiveAvgPool1d(1): (Bb, C, 1)
    lane2 = jax.lax.broadcasted_iota(jnp.int32, (bb, c, 2), 2)
    pooled = jnp.where(lane2 == 0, mx, av)             # (Bb, C, 2): both branches at once

    w1k = w1k_ref[...]                                  # (CR, C, 1)
    w2k = w2k_ref[...]                                  # (CR, C, 1)
    logits = jnp.zeros((bb, c, 1), jnp.float32)
    for r in range(cr):                                 # CR = 2: tiny static unroll
        h_r = jnp.sum(w1k[r] * pooled, axis=1, keepdims=True)   # layer 1: (Bb, 1, 2)
        h_r = jnp.maximum(h_r, 0.0)                              # ReLU (per branch)
        # layer 2 is linear => sum the ReLU'd branches first, run layer 2 once
        h_sum = jnp.sum(h_r, axis=-1, keepdims=True)             # (Bb, 1, 1)
        logits = logits + w2k[r] * h_sum                         # (Bb, C, 1)
    xc = jax.nn.sigmoid(logits) * x                     # channel-weighted x: (Bb, C, L)

    # ------------- spatial attention (k=9 conv, lane-aligned) ---------------
    smax = jnp.max(xc, axis=1, keepdims=True)           # (Bb, 1, L)
    smean = jnp.mean(xc, axis=1, keepdims=True)         # (Bb, 1, L)

    sub = jax.lax.broadcasted_iota(jnp.int32, (bb, 2, l), 1)     # hoisted iotas
    lane = jax.lax.broadcasted_iota(jnp.int32, (bb, 2, l), 2)
    is_row0 = sub == 0                                  # hoisted row predicate
    maps = jnp.where(is_row0, smax, smean)              # (Bb, 2, L): row0=max, row1=mean

    acc = jnp.zeros((bb, 2, l), jnp.float32)
    for k in range(K):                                  # 9 taps, static unroll
        # tap value at lane i is maps[..., i + k - PAD]; zero outside [0, L)
        shift = (PAD - k) % l
        shifted = pltpu.roll(maps, shift, axis=2) if shift else maps
        wk = jnp.where(is_row0, wc_ref[0, k], wc_ref[1, k])       # per-row tap weight
        term = wk * shifted
        if k < PAD:                                     # only a left-edge hole
            term = jnp.where(lane >= PAD - k, term, 0.0)
        elif k > PAD:                                   # only a right-edge hole
            term = jnp.where(lane < l - (k - PAD), term, 0.0)
        acc = acc + term

    conv = jnp.sum(acc, axis=1, keepdims=True)          # sum max/mean streams: (Bb, 1, L)
    o_ref[...] = (jax.nn.sigmoid(conv) * xc).astype(o_ref.dtype)


# ------------------------------- wrapper ------------------------------------
def cbam_pallas(x, w1, w2, wc, *, batch_block=None):
    """x: (B, C, L); w1: (CR, C); w2: (C, CR); wc: (2, K)."""
    b, c, l = x.shape
    cr = w1.shape[0]
    if batch_block is None:
        # One grid step for the whole batch (best on v5e/v6e, 1 TC).  On v7x
        # with large B, pass batch_block <= B // 2 so both TensorCores get
        # "parallel" blocks, and re-derive the block size against its 64 MiB VMEM.
        batch_block = b
    assert b % batch_block == 0, "batch_block must divide batch"
    # TODO(synk): if L is ever not a multiple of 128, pad the sequence axis here
    # (and mask the pooled max/mean) to keep the output block lane-dense.

    # One-time parameter prep: shape both MLP weights as (CR, C, 1) so the
    # kernel's fused VPU pass only needs size-1 broadcasts.
    w1k = w1[:, :, None]                   # row r = layer-1 weights of hidden unit r
    w2k = jnp.transpose(w2)[:, :, None]    # row r = layer-2 column for hidden unit r

    return pl.pallas_call(
        cbam_kernel,
        out_shape=jax.ShapeDtypeStruct((b, c, l), x.dtype),
        grid=(b // batch_block,),
        in_specs=[
            pl.BlockSpec((batch_block, c, l), lambda i: (i, 0, 0)),
            pl.BlockSpec((cr, c, 1), lambda i: (0, 0, 0)),
            pl.BlockSpec((cr, c, 1), lambda i: (0, 0, 0)),
            pl.BlockSpec(memory_space=pltpu.MemorySpace.SMEM),
        ],
        out_specs=pl.BlockSpec((batch_block, c, l), lambda i: (i, 0, 0)),
        compiler_params=pltpu.CompilerParams(
            dimension_semantics=("parallel",)),
    )(x, w1k, w2k, wc)


# --------------------------- pure-JAX reference -----------------------------
def cbam_ref(x, w1, w2, wc):
    mx = jnp.max(x, axis=-1, keepdims=True)               # (B, C, 1)
    av = jnp.mean(x, axis=-1, keepdims=True)

    def mlp(v):
        h = jnp.maximum(jnp.einsum('rc,bcl->brl', w1, v), 0.0)
        return jnp.einsum('cr,brl->bcl', w2, h)

    channel_out = jax.nn.sigmoid(mlp(mx) + mlp(av))
    xc = channel_out * x
    smax = jnp.max(xc, axis=1, keepdims=True)
    smean = jnp.mean(xc, axis=1, keepdims=True)
    cat = jnp.concatenate([smax, smean], axis=1)           # (B, 2, L)
    conv = jax.lax.conv_general_dilated(
        cat, wc[None, :, :], window_strides=(1,), padding=[(PAD, PAD)],
        dimension_numbers=('NCH', 'OIH', 'NCH'))
    spatial_out = jax.nn.sigmoid(conv)
    return spatial_out * xc


# --------------------------------- main --------------------------------------
if __name__ == "__main__":
    key = jax.random.PRNGKey(0)
    kx, k1, k2, kc = jax.random.split(key, 4)

    x = jax.random.normal(kx, (B, C, L), dtype=jnp.float32)
    # Parameter shapes mirror the PyTorch module (kernel-size-1 convs squeezed):
    #   mlp[0].weight: (C//r, C, 1) -> (CR, C)
    #   mlp[2].weight: (C, C//r, 1) -> (C, CR)
    #   conv.weight  : (1, 2, K)    -> (2, K)
    w1 = jax.random.normal(k1, (CR, C), dtype=jnp.float32) * 0.1
    w2 = jax.random.normal(k2, (C, CR), dtype=jnp.float32) * 0.1
    wc = jax.random.normal(kc, (2, K), dtype=jnp.float32) * 0.1

    out = jax.block_until_ready(cbam_pallas(x, w1, w2, wc))
    ref = cbam_ref(x, w1, w2, wc)

    assert out.shape == (B, C, L)
    assert jnp.allclose(out, ref, atol=1e-5, rtol=1e-5), "mismatch vs reference"

    print("KERNEL_OK")
</pallas_src>

<mosaic_0001>
module attributes {stable_mosaic.version = 11 : i64} {
  func.func @cbam_kernel(%arg0: i32, %arg1: memref<2x32x128xf32, #tpu.memory_space<vmem>>, %arg2: memref<2x32x1xf32, #tpu.memory_space<vmem>>, %arg3: memref<2x32x1xf32, #tpu.memory_space<vmem>>, %arg4: memref<2x9xf32, #tpu.memory_space<smem>>, %arg5: memref<2x32x128xf32, #tpu.memory_space<vmem>>) attributes {dimension_semantics = [#tpu.dimension_semantics<parallel>], iteration_bounds = array<i64: 1>, scalar_prefetch = 0 : i64, scratch_operands = 0 : i64, tpu.core_type = #tpu.core_type<tc>, window_params = [{transform_indices = @transform_0, window_bounds = array<i64: 2, 32, 128>}, {pipeline_mode = #tpu.pipeline_mode<synchronous>, transform_indices = @transform_1, window_bounds = array<i64: 2, 32, 1>}, {pipeline_mode = #tpu.pipeline_mode<synchronous>, transform_indices = @transform_2, window_bounds = array<i64: 2, 32, 1>}, {transform_indices = @transform_3, window_bounds = array<i64: 2, 9>}, {transform_indices = @transform_4, window_bounds = array<i64: 2, 32, 128>}]} {
    %c0 = arith.constant 0 : index
    %c0_0 = arith.constant 0 : index
    %c0_1 = arith.constant 0 : index
    %0 = vector.load %arg1[%c0, %c0_0, %c0_1] : memref<2x32x128xf32, #tpu.memory_space<vmem>>, vector<2x32x128xf32>
    %cst = arith.constant dense<0xFF800000> : vector<2x32xf32>
    %1 = vector.multi_reduction <maximumf>, %0, %cst [2] : vector<2x32x128xf32> to vector<2x32xf32>
    %2 = vector.shape_cast %1 : vector<2x32xf32> to vector<2x32x1xf32>
    %cst_2 = arith.constant dense<0.000000e+00> : vector<2x32xf32>
    %3 = vector.multi_reduction <add>, %0, %cst_2 [2] : vector<2x32x128xf32> to vector<2x32xf32>
    %4 = vector.shape_cast %3 : vector<2x32xf32> to vector<2x32x1xf32>
    %cst_3 = arith.constant 1.280000e+02 : f32
    %5 = vector.broadcast %cst_3 : f32 to vector<2x32x1xf32>
    %6 = arith.divf %4, %5 : vector<2x32x1xf32>
    %7 = tpu.iota {dimensions = array<i32: 2>} : vector<2x32x2xi32>
    %c0_i32 = arith.constant 0 : i32
    %8 = vector.broadcast %c0_i32 : i32 to vector<2x32x2xi32>
    %9 = arith.cmpi eq, %7, %8 : vector<2x32x2xi32>
    %10 = vector.shape_cast %2 : vector<2x32x1xf32> to vector<2x32x1xf32>
    %11 = vector.broadcast %10 : vector<2x32x1xf32> to vector<2x32x2xf32>
    %12 = vector.shape_cast %6 : vector<2x32x1xf32> to vector<2x32x1xf32>
    %13 = vector.broadcast %12 : vector<2x32x1xf32> to vector<2x32x2xf32>
    %14 = arith.select %9, %11, %13 : vector<2x32x2xi1>, vector<2x32x2xf32>
    %c0_4 = arith.constant 0 : index
    %c0_5 = arith.constant 0 : index
    %c0_6 = arith.constant 0 : index
    %15 = vector.load %arg2[%c0_4, %c0_5, %c0_6] : memref<2x32x1xf32, #tpu.memory_space<vmem>>, vector<2x32x1xf32>
    %c0_7 = arith.constant 0 : index
    %c0_8 = arith.constant 0 : index
    %c0_9 = arith.constant 0 : index
    %16 = vector.load %arg3[%c0_7, %c0_8, %c0_9] : memref<2x32x1xf32, #tpu.memory_space<vmem>>, vector<2x32x1xf32>
    %cst_10 = arith.constant 0.000000e+00 : f32
    %17 = vector.broadcast %cst_10 : f32 to vector<2x32x1xf32>
    %18 = vector.extract_strided_slice %15 {offsets = [0, 0, 0], sizes = [1, 32, 1], strides = [1, 1, 1]} : vector<2x32x1xf32> to vector<1x32x1xf32>
    %19 = vector.shape_cast %18 : vector<1x32x1xf32> to vector<32x1xf32>
    %20 = vector.shape_cast %19 : vector<32x1xf32> to vector<1x32x1xf32>
    %21 = vector.broadcast %20 : vector<1x32x1xf32> to vector<2x32x2xf32>
    %22 = arith.mulf %21, %14 : vector<2x32x2xf32>
    %cst_11 = arith.constant dense<0.000000e+00> : vector<2x2xf32>
    %23 = vector.multi_reduction <add>, %22, %cst_11 [1] : vector<2x32x2xf32> to vector<2x2xf32>
    %24 = vector.shape_cast %23 : vector<2x2xf32> to vector<2x1x2xf32>
    %cst_12 = arith.constant 0.000000e+00 : f32
    %25 = vector.broadcast %cst_12 : f32 to vector<2x1x2xf32>
    %26 = arith.maximumf %24, %25 : vector<2x1x2xf32>
    %cst_13 = arith.constant dense<0.000000e+00> : vector<2x1xf32>
    %27 = vector.multi_reduction <add>, %26, %cst_13 [2] : vector<2x1x2xf32> to vector<2x1xf32>
    %28 = vector.shape_cast %27 : vector<2x1xf32> to vector<2x1x1xf32>
    %29 = vector.extract_strided_slice %16 {offsets = [0, 0, 0], sizes = [1, 32, 1], strides = [1, 1, 1]} : vector<2x32x1xf32> to vector<1x32x1xf32>
    %30 = vector.shape_cast %29 : vector<1x32x1xf32> to vector<32x1xf32>
    %31 = vector.shape_cast %30 : vector<32x1xf32> to vector<1x32x1xf32>
    %32 = vector.broadcast %31 : vector<1x32x1xf32> to vector<2x32x1xf32>
    %33 = vector.broadcast %28 : vector<2x1x1xf32> to vector<2x32x1xf32>
    %34 = arith.mulf %32, %33 : vector<2x32x1xf32>
    %35 = arith.addf %17, %34 : vector<2x32x1xf32>
    %36 = vector.extract_strided_slice %15 {offsets = [1, 0, 0], sizes = [1, 32, 1], strides = [1, 1, 1]} : vector<2x32x1xf32> to vector<1x32x1xf32>
    %37 = vector.shape_cast %36 : vector<1x32x1xf32> to vector<32x1xf32>
    %38 = vector.shape_cast %37 : vector<32x1xf32> to vector<1x32x1xf32>
    %39 = vector.broadcast %38 : vector<1x32x1xf32> to vector<2x32x2xf32>
    %40 = arith.mulf %39, %14 : vector<2x32x2xf32>
    %cst_14 = arith.constant dense<0.000000e+00> : vector<2x2xf32>
    %41 = vector.multi_reduction <add>, %40, %cst_14 [1] : vector<2x32x2xf32> to vector<2x2xf32>
    %42 = vector.shape_cast %41 : vector<2x2xf32> to vector<2x1x2xf32>
    %cst_15 = arith.constant 0.000000e+00 : f32
    %43 = vector.broadcast %cst_15 : f32 to vector<2x1x2xf32>
    %44 = arith.maximumf %42, %43 : vector<2x1x2xf32>
    %cst_16 = arith.constant dense<0.000000e+00> : vector<2x1xf32>
    %45 = vector.multi_reduction <add>, %44, %cst_16 [2] : vector<2x1x2xf32> to vector<2x1xf32>
    %46 = vector.shape_cast %45 : vector<2x1xf32> to vector<2x1x1xf32>
    %47 = vector.extract_strided_slice %16 {offsets = [1, 0, 0], sizes = [1, 32, 1], strides = [1, 1, 1]} : vector<2x32x1xf32> to vector<1x32x1xf32>
    %48 = vector.shape_cast %47 : vector<1x32x1xf32> to vector<32x1xf32>
    %49 = vector.shape_cast %48 : vector<32x1xf32> to vector<1x32x1xf32>
    %50 = vector.broadcast %49 : vector<1x32x1xf32> to vector<2x32x1xf32>
    %51 = vector.broadcast %46 : vector<2x1x1xf32> to vector<2x32x1xf32>
    %52 = arith.mulf %50, %51 : vector<2x32x1xf32>
    %53 = arith.addf %35, %52 : vector<2x32x1xf32>
    %54 = arith.negf %53 : vector<2x32x1xf32>
    %55 = math.exp %54 : vector<2x32x1xf32>
    %cst_17 = arith.constant 1.000000e+00 : f32
    %56 = vector.broadcast %cst_17 : f32 to vector<2x32x1xf32>
    %57 = arith.addf %56, %55 : vector<2x32x1xf32>
    %58 = arith.divf %56, %57 : vector<2x32x1xf32>
    %59 = vector.broadcast %58 : vector<2x32x1xf32> to vector<2x32x128xf32>
    %60 = arith.mulf %59, %0 : vector<2x32x128xf32>
    %cst_18 = arith.constant dense<0xFF800000> : vector<2x128xf32>
    %61 = vector.multi_reduction <maximumf>, %60, %cst_18 [1] : vector<2x32x128xf32> to vector<2x128xf32>
    %62 = vector.shape_cast %61 : vector<2x128xf32> to vector<2x1x128xf32>
    %cst_19 = arith.constant dense<0.000000e+00> : vector<2x128xf32>
    %63 = vector.multi_reduction <add>, %60, %cst_19 [1] : vector<2x32x128xf32> to vector<2x128xf32>
    %64 = vector.shape_cast %63 : vector<2x128xf32> to vector<2x1x128xf32>
    %cst_20 = arith.constant 3.200000e+01 : f32
    %65 = vector.broadcast %cst_20 : f32 to vector<2x1x128xf32>
    %66 = arith.divf %64, %65 : vector<2x1x128xf32>
    %67 = tpu.iota {dimensions = array<i32: 1>} : vector<2x2x128xi32>
    %68 = tpu.iota {dimensions = array<i32: 2>} : vector<2x2x128xi32>
    %c0_i32_21 = arith.constant 0 : i32
    %69 = vector.broadcast %c0_i32_21 : i32 to vector<2x2x128xi32>
    %70 = arith.cmpi eq, %67, %69 : vector<2x2x128xi32>
    %71 = vector.shape_cast %62 : vector<2x1x128xf32> to vector<2x1x128xf32>
    %72 = vector.broadcast %71 : vector<2x1x128xf32> to vector<2x2x128xf32>
    %73 = vector.shape_cast %66 : vector<2x1x128xf32> to vector<2x1x128xf32>
    %74 = vector.broadcast %73 : vector<2x1x128xf32> to vector<2x2x128xf32>
    %75 = arith.select %70, %72, %74 : vector<2x2x128xi1>, vector<2x2x128xf32>
    %cst_22 = arith.constant 0.000000e+00 : f32
    %76 = vector.broadcast %cst_22 : f32 to vector<2x2x128xf32>
    %c4_i32 = arith.constant 4 : i32
    %77 = tpu.dynamic_rotate %75 by %c4_i32 dim 2 : vector<2x2x128xf32>, i32 -> vector<2x2x128xf32>
    %c0_23 = arith.constant 0 : index
    %c0_24 = arith.constant 0 : index
    %78 = memref.load %arg4[%c0_23, %c0_24] : memref<2x9xf32, #tpu.memory_space<smem>>
    %c1 = arith.constant 1 : index
    %c0_25 = arith.constant 0 : index
    %79 = memref.load %arg4[%c1, %c0_25] : memref<2x9xf32, #tpu.memory_space<smem>>
    %80 = vector.broadcast %78 : f32 to vector<2x2x128xf32>
    %81 = vector.broadcast %79 : f32 to vector<2x2x128xf32>
    %82 = arith.select %70, %80, %81 : vector<2x2x128xi1>, vector<2x2x128xf32>
    %83 = arith.mulf %82, %77 : vector<2x2x128xf32>
    %c4_i32_26 = arith.constant 4 : i32
    %84 = vector.broadcast %c4_i32_26 : i32 to vector<2x2x128xi32>
    %85 = arith.cmpi sge, %68, %84 : vector<2x2x128xi32>
    %cst_27 = arith.constant 0.000000e+00 : f32
    %86 = vector.broadcast %cst_27 : f32 to vector<2x2x128xf32>
    %87 = arith.select %85, %83, %86 : vector<2x2x128xi1>, vector<2x2x128xf32>
    %88 = arith.addf %76, %87 : vector<2x2x128xf32>
    %c3_i32 = arith.constant 3 : i32
    %89 = tpu.dynamic_rotate %75 by %c3_i32 dim 2 : vector<2x2x128xf32>, i32 -> vector<2x2x128xf32>
    %c0_28 = arith.constant 0 : index
    %c1_29 = arith.constant 1 : index
    %90 = memref.load %arg4[%c0_28, %c1_29] : memref<2x9xf32, #tpu.memory_space<smem>>
    %c1_30 = arith.constant 1 : index
    %c1_31 = arith.constant 1 : index
    %91 = memref.load %arg4[%c1_30, %c1_31] : memref<2x9xf32, #tpu.memory_space<smem>>
    %92 = vector.broadcast %90 : f32 to vector<2x2x128xf32>
    %93 = vector.broadcast %91 : f32 to vector<2x2x128xf32>
    %94 = arith.select %70, %92, %93 : vector<2x2x128xi1>, vector<2x2x128xf32>
    %95 = arith.mulf %94, %89 : vector<2x2x128xf32>
    %c3_i32_32 = arith.constant 3 : i32
    %96 = vector.broadcast %c3_i32_32 : i32 to vector<2x2x128xi32>
    %97 = arith.cmpi sge, %68, %96 : vector<2x2x128xi32>
    %cst_33 = arith.constant 0.000000e+00 : f32
    %98 = vector.broadcast %cst_33 : f32 to vector<2x2x128xf32>
    %99 = arith.select %97, %95, %98 : vector<2x2x128xi1>, vector<2x2x128xf32>
    %100 = arith.addf %88, %99 : vector<2x2x128xf32>
    %c2_i32 = arith.constant 2 : i32
    %101 = tpu.dynamic_rotate %75 by %c2_i32 dim 2 : vector<2x2x128xf32>, i32 -> vector<2x2x128xf32>
    %c0_34 = arith.constant 0 : index
    %c2 = arith.constant 2 : index
    %102 = memref.load %arg4[%c0_34, %c2] : memref<2x9xf32, #tpu.memory_space<smem>>
    %c1_35 = arith.constant 1 : index
    %c2_36 = arith.constant 2 : index
    %103 = memref.load %arg4[%c1_35, %c2_36] : memref<2x9xf32, #tpu.memory_space<smem>>
    %104 = vector.broadcast %102 : f32 to vector<2x2x128xf32>
    %105 = vector.broadcast %103 : f32 to vector<2x2x128xf32>
    %106 = arith.select %70, %104, %105 : vector<2x2x128xi1>, vector<2x2x128xf32>
    %107 = arith.mulf %106, %101 : vector<2x2x128xf32>
    %c2_i32_37 = arith.constant 2 : i32
    %108 = vector.broadcast %c2_i32_37 : i32 to vector<2x2x128xi32>
    %109 = arith.cmpi sge, %68, %108 : vector<2x2x128xi32>
    %cst_38 = arith.constant 0.000000e+00 : f32
    %110 = vector.broadcast %cst_38 : f32 to vector<2x2x128xf32>
    %111 = arith.select %109, %107, %110 : vector<2x2x128xi1>, vector<2x2x128xf32>
    %112 = arith.addf %100, %111 : vector<2x2x128xf32>
    %c1_i32 = arith.constant 1 : i32
    %113 = tpu.dynamic_rotate %75 by %c1_i32 dim 2 : vector<2x2x128xf32>, i32 -> vector<2x2x128xf32>
    %c0_39 = arith.constant 0 : index
    %c3 = arith.constant 3 : index
    %114 = memref.load %arg4[%c0_39, %c3] : memref<2x9xf32, #tpu.memory_space<smem>>
    %c1_40 = arith.constant 1 : index
    %c3_41 = arith.constant 3 : index
    %115 = memref.load %arg4[%c1_40, %c3_41] : memref<2x9xf32, #tpu.memory_space<smem>>
    %116 = vector.broadcast %114 : f32 to vector<2x2x128xf32>
    %117 = vector.broadcast %115 : f32 to vector<2x2x128xf32>
    %118 = arith.select %70, %116, %117 : vector<2x2x128xi1>, vector<2x2x128xf32>
    %119 = arith.mulf %118, %113 : vector<2x2x128xf32>
    %c1_i32_42 = arith.constant 1 : i32
    %120 = vector.broadcast %c1_i32_42 : i32 to vector<2x2x128xi32>
    %121 = arith.cmpi sge, %68, %120 : vector<2x2x128xi32>
    %cst_43 = arith.constant 0.000000e+00 : f32
    %122 = vector.broadcast %cst_43 : f32 to vector<2x2x128xf32>
    %123 = arith.select %121, %119, %122 : vector<2x2x128xi1>, vector<2x2x128xf32>
    %124 = arith.addf %112, %123 : vector<2x2x128xf32>
    %c0_44 = arith.constant 0 : index
    %c4 = arith.constant 4 : index
    %125 = memref.load %arg4[%c0_44, %c4] : memref<2x9xf32, #tpu.memory_space<smem>>
    %c1_45 = arith.constant 1 : index
    %c4_46 = arith.constant 4 : index
    %126 = memref.load %arg4[%c1_45, %c4_46] : memref<2x9xf32, #tpu.memory_space<smem>>
    %127 = vector.broadcast %125 : f32 to vector<2x2x128xf32>
    %128 = vector.broadcast %126 : f32 to vector<2x2x128xf32>
    %129 = arith.select %70, %127, %128 : vector<2x2x128xi1>, vector<2x2x128xf32>
    %130 = arith.mulf %129, %75 : vector<2x2x128xf32>
    %131 = arith.addf %124, %130 : vector<2x2x128xf32>
    %c127_i32 = arith.constant 127 : i32
    %132 = tpu.dynamic_rotate %75 by %c127_i32 dim 2 : vector<2x2x128xf32>, i32 -> vector<2x2x128xf32>
    %c0_47 = arith.constant 0 : index
    %c5 = arith.constant 5 : index
    %133 = memref.load %arg4[%c0_47, %c5] : memref<2x9xf32, #tpu.memory_space<smem>>
    %c1_48 = arith.constant 1 : index
    %c5_49 = arith.constant 5 : index
    %134 = memref.load %arg4[%c1_48, %c5_49] : memref<2x9xf32, #tpu.memory_space<smem>>
    %135 = vector.broadcast %133 : f32 to vector<2x2x128xf32>
    %136 = vector.broadcast %134 : f32 to vector<2x2x128xf32>
    %137 = arith.select %70, %135, %136 : vector<2x2x128xi1>, vector<2x2x128xf32>
    %138 = arith.mulf %137, %132 : vector<2x2x128xf32>
    %c127_i32_50 = arith.constant 127 : i32
    %139 = vector.broadcast %c127_i32_50 : i32 to vector<2x2x128xi32>
    %140 = arith.cmpi slt, %68, %139 : vector<2x2x128xi32>
    %cst_51 = arith.constant 0.000000e+00 : f32
    %141 = vector.broadcast %cst_51 : f32 to vector<2x2x128xf32>
    %142 = arith.select %140, %138, %141 : vector<2x2x128xi1>, vector<2x2x128xf32>
    %143 = arith.addf %131, %142 : vector<2x2x128xf32>
    %c126_i32 = arith.constant 126 : i32
    %144 = tpu.dynamic_rotate %75 by %c126_i32 dim 2 : vector<2x2x128xf32>, i32 -> vector<2x2x128xf32>
    %c0_52 = arith.constant 0 : index
    %c6 = arith.constant 6 : index
    %145 = memref.load %arg4[%c0_52, %c6] : memref<2x9xf32, #tpu.memory_space<smem>>
    %c1_53 = arith.constant 1 : index
    %c6_54 = arith.constant 6 : index
    %146 = memref.load %arg4[%c1_53, %c6_54] : memref<2x9xf32, #tpu.memory_space<smem>>
    %147 = vector.broadcast %145 : f32 to vector<2x2x128xf32>
    %148 = vector.broadcast %146 : f32 to vector<2x2x128xf32>
    %149 = arith.select %70, %147, %148 : vector<2x2x128xi1>, vector<2x2x128xf32>
    %150 = arith.mulf %149, %144 : vector<2x2x128xf32>
    %c126_i32_55 = arith.constant 126 : i32
    %151 = vector.broadcast %c126_i32_55 : i32 to vector<2x2x128xi32>
    %152 = arith.cmpi slt, %68, %151 : vector<2x2x128xi32>
    %cst_56 = arith.constant 0.000000e+00 : f32
    %153 = vector.broadcast %cst_56 : f32 to vector<2x2x128xf32>
    %154 = arith.select %152, %150, %153 : vector<2x2x128xi1>, vector<2x2x128xf32>
    %155 = arith.addf %143, %154 : vector<2x2x128xf32>
    %c125_i32 = arith.constant 125 : i32
    %156 = tpu.dynamic_rotate %75 by %c125_i32 dim 2 : vector<2x2x128xf32>, i32 -> vector<2x2x128xf32>
    %c0_57 = arith.constant 0 : index
    %c7 = arith.constant 7 : index
    %157 = memref.load %arg4[%c0_57, %c7] : memref<2x9xf32, #tpu.memory_space<smem>>
    %c1_58 = arith.constant 1 : index
    %c7_59 = arith.constant 7 : index
    %158 = memref.load %arg4[%c1_58, %c7_59] : memref<2x9xf32, #tpu.memory_space<smem>>
    %159 = vector.broadcast %157 : f32 to vector<2x2x128xf32>
    %160 = vector.broadcast %158 : f32 to vector<2x2x128xf32>
    %161 = arith.select %70, %159, %160 : vector<2x2x128xi1>, vector<2x2x128xf32>
    %162 = arith.mulf %161, %156 : vector<2x2x128xf32>
    %c125_i32_60 = arith.constant 125 : i32
    %163 = vector.broadcast %c125_i32_60 : i32 to vector<2x2x128xi32>
    %164 = arith.cmpi slt, %68, %163 : vector<2x2x128xi32>
    %cst_61 = arith.constant 0.000000e+00 : f32
    %165 = vector.broadcast %cst_61 : f32 to vector<2x2x128xf32>
    %166 = arith.select %164, %162, %165 : vector<2x2x128xi1>, vector<2x2x128xf32>
    %167 = arith.addf %155, %166 : vector<2x2x128xf32>
    %c124_i32 = arith.constant 124 : i32
    %168 = tpu.dynamic_rotate %75 by %c124_i32 dim 2 : vector<2x2x128xf32>, i32 -> vector<2x2x128xf32>
    %c0_62 = arith.constant 0 : index
    %c8 = arith.constant 8 : index
    %169 = memref.load %arg4[%c0_62, %c8] : memref<2x9xf32, #tpu.memory_space<smem>>
    %c1_63 = arith.constant 1 : index
    %c8_64 = arith.constant 8 : index
    %170 = memref.load %arg4[%c1_63, %c8_64] : memref<2x9xf32, #tpu.memory_space<smem>>
    %171 = vector.broadcast %169 : f32 to vector<2x2x128xf32>
    %172 = vector.broadcast %170 : f32 to vector<2x2x128xf32>
    %173 = arith.select %70, %171, %172 : vector<2x2x128xi1>, vector<2x2x128xf32>
    %174 = arith.mulf %173, %168 : vector<2x2x128xf32>
    %c124_i32_65 = arith.constant 124 : i32
    %175 = vector.broadcast %c124_i32_65 : i32 to vector<2x2x128xi32>
    %176 = arith.cmpi slt, %68, %175 : vector<2x2x128xi32>
    %cst_66 = arith.constant 0.000000e+00 : f32
    %177 = vector.broadcast %cst_66 : f32 to vector<2x2x128xf32>
    %178 = arith.select %176, %174, %177 : vector<2x2x128xi1>, vector<2x2x128xf32>
    %179 = arith.addf %167, %178 : vector<2x2x128xf32>
    %cst_67 = arith.constant dense<0.000000e+00> : vector<2x128xf32>
    %180 = vector.multi_reduction <add>, %179, %cst_67 [1] : vector<2x2x128xf32> to vector<2x128xf32>
    %181 = vector.shape_cast %180 : vector<2x128xf32> to vector<2x1x128xf32>
    %182 = arith.negf %181 : vector<2x1x128xf32>
    %183 = math.exp %182 : vector<2x1x128xf32>
    %cst_68 = arith.constant 1.000000e+00 : f32
    %184 = vector.broadcast %cst_68 : f32 to vector<2x1x128xf32>
    %185 = arith.addf %184, %183 : vector<2x1x128xf32>
    %186 = arith.divf %184, %185 : vector<2x1x128xf32>
    %187 = vector.broadcast %186 : vector<2x1x128xf32> to vector<2x32x128xf32>
    %188 = arith.mulf %187, %60 : vector<2x32x128xf32>
    %c0_69 = arith.constant 0 : index
    %c0_70 = arith.constant 0 : index
    %c0_71 = arith.constant 0 : index
    %189 = vector.load %arg5[%c0_69, %c0_70, %c0_71] : memref<2x32x128xf32, #tpu.memory_space<vmem>>, vector<2x32x128xf32>
    tpu.vector_store %arg5[%c0_69, %c0_70, %c0_71], %188 {strides = array<i32>} : memref<2x32x128xf32, #tpu.memory_space<vmem>>, vector<2x32x128xf32>,
    return
  }
  func.func @transform_0(%arg0: i32) -> (i32, i32, i32) {
    %c0_i32 = arith.constant 0 : i32
    %c0_i32_0 = arith.constant 0 : i32
    %c0_i32_1 = arith.constant 0 : i32
    return %arg0, %c0_i32, %c0_i32_0 : i32, i32, i32
  }
  func.func @transform_1(%arg0: i32) -> (i32, i32, i32) {
    %c0_i32 = arith.constant 0 : i32
    %c0_i32_0 = arith.constant 0 : i32
    %c0_i32_1 = arith.constant 0 : i32
    %c0_i32_2 = arith.constant 0 : i32
    return %c0_i32, %c0_i32_0, %c0_i32_1 : i32, i32, i32
  }
  func.func @transform_2(%arg0: i32) -> (i32, i32, i32) {
    %c0_i32 = arith.constant 0 : i32
    %c0_i32_0 = arith.constant 0 : i32
    %c0_i32_1 = arith.constant 0 : i32
    %c0_i32_2 = arith.constant 0 : i32
    return %c0_i32, %c0_i32_0, %c0_i32_1 : i32, i32, i32
  }
  func.func @transform_3(%arg0: i32) -> (i32, i32) {
    %c0_i32 = arith.constant 0 : i32
    %c0_i32_0 = arith.constant 0 : i32
    %c0_i32_1 = arith.constant 0 : i32
    return %c0_i32, %c0_i32_0 : i32, i32
  }
  func.func @transform_4(%arg0: i32) -> (i32, i32, i32) {
    %c0_i32 = arith.constant 0 : i32
    %c0_i32_0 = arith.constant 0 : i32
    %c0_i32_1 = arith.constant 0 : i32
    return %arg0, %c0_i32, %c0_i32_0 : i32, i32, i32
  }
}

</mosaic_0001>

<llo_original>
// kernel: tpu_custom_call.1
$region0: #{tpu_custom_call.1}
  #allocation0 [shape = 'u32[]', space=smem, size = 0x4, offset = 0x4, fixed_abs, tag = 'smem constant byte address 0x4 - core index']
  #allocation1 [shape = 'u32[72,128]{1,0:T(1,128)}', space=vmem, size = 0x9000, scoped, tag = 'internal scratch']
  %s0 = inlined_call_operand.vmem [shape: f32[2,32,128], index: 0, kind: input, shape index: {}]
  %s1 = inlined_call_operand.vmem [shape: f32[2,32,1], index: 1, kind: input, shape index: {}]
  %s2 = inlined_call_operand.vmem [shape: f32[2,32,1], index: 2, kind: input, shape index: {}]
  %s3 = inlined_call_operand.vmem [shape: f32[2,9], index: 3, kind: input, shape index: {}]
  %s4 = inlined_call_operand.hbm [shape: f32[2,32,128], index: 4, kind: output, shape index: {}]
  %s5 = sld [smem:[#allocation0]]
  $region30: #{tpu_custom_call.1} parent=0
    _
  %s7 = ssub.s32 1, %s5
  %s8 = scalar_select 0, %s7, %s5
  $region1: #{tpu_custom_call.1} parent=0
    #allocation2 [shape = 'u8[1024]{0}', space=smem, size = 0x400, scoped, tag = 'input window, operand 3, single buffered']
    #allocation3 [shape = 's32[1]{0}', space=sflag, size = 0x4, scoped, tag = 'scoped memory for tpu_custom_call.1']
    #allocation4 [shape = 's32[1]{0}', space=sflag, size = 0x4, scoped, tag = 'scoped memory for tpu_custom_call.1']
    #allocation5 [shape = 'u8[32768]{0}', space=vmem, size = 0x8000, scoped, tag = 'output window, operand 0, single buffered']
    %9 = vsyncpa [#allocation4], 0
    %10 = vsyncpa [#allocation3], 0
    // Predicated region
    $region2: #{tpu_custom_call.1} parent=1 // pred_check
      _
    $region3: #{tpu_custom_call.1} parent=1 // pred_check_branch
      %12 = sbr.rel (0) target = $region5
    $region4: #{tpu_custom_call.1} parent=1 // pred_region
      _
    $region5: #{tpu_custom_call.1} parent=1 // pred_fallthru
      _
    // Predicated region
    $region6: #{tpu_custom_call.1} parent=1 // pred_check
      _
    $region7: #{tpu_custom_call.1} parent=1 // pred_check_branch
      %14 = sbr.rel (0) target = $region9
    $region8: #{tpu_custom_call.1} parent=1 // pred_region
      _
    $region9: #{tpu_custom_call.1} parent=1 // pred_fallthru
      _
    // Predicated region
    $region10: #{tpu_custom_call.1} parent=1 // pred_check
      _
    $region11: #{tpu_custom_call.1} parent=1 // pred_check_branch
      %16 = sbr.rel (0) target = $region13
    $region12: #{tpu_custom_call.1} parent=1 // pred_region
      _
    $region13: #{tpu_custom_call.1} parent=1 // pred_fallthru
      _
    // Predicated region
    $region14: #{tpu_custom_call.1} parent=1 // pred_check
      _
    $region15: #{tpu_custom_call.1} parent=1 // pred_check_branch
      %18 = sbr.rel (0) target = $region17
    $region16: #{tpu_custom_call.1} parent=1 // pred_region
      %20 = vsyncadd [#allocation4], 0
      %s22 = sshll.u32 %s3, 4
      %s23 = int_to_ptr.vmem [resolvable:$true] %s22
      %25 = dma.vmem_to_smem %s23, 32, [#allocation2], [#allocation4]
    $region17: #{tpu_custom_call.1} parent=1 // pred_fallthru
      _
    // Predicated region
    $region18: #{tpu_custom_call.1} parent=1 // pred_check
      _
    $region19: #{tpu_custom_call.1} parent=1 // pred_check_branch
      %27 = sbr.rel (0) target = $region21
    $region20: #{tpu_custom_call.1} parent=1 // pred_region
      %29 = dma.done [#allocation4], 32
    $region21: #{tpu_custom_call.1} parent=1 // pred_fallthru
      _
    %30 = sfence
    %v31 = vld [vmem:[%s0] sm:$0xff]
    %v32 = vld [vmem:[%s0 + $0x8] sm:$0xff]
    %v33 = vld [vmem:[%s0 + $0x10] sm:$0xff]
    %v34 = vld [vmem:[%s0 + $0x18] sm:$0xff]
    %v35 = vld [vmem:[%s0 + $0x20] sm:$0xff]
    %v36 = vld [vmem:[%s0 + $0x28] sm:$0xff]
    %v37 = vld [vmem:[%s0 + $0x30] sm:$0xff]
    %v38 = vld [vmem:[%s0 + $0x38] sm:$0xff]
    %39 = vmax.xlane.f32.xlu0 %v31
    %v40 = vpop.xlane.xlu0 %39
    %41 = vmax.xlane.f32.xlu0 %v32
    %v42 = vpop.xlane.xlu0 %41
    %43 = vmax.xlane.f32.xlu0 %v33
    %v44 = vpop.xlane.xlu0 %43
    %45 = vmax.xlane.f32.xlu0 %v34
    %v46 = vpop.xlane.xlu0 %45
    %47 = vmax.xlane.f32.xlu0 %v35
    %v48 = vpop.xlane.xlu0 %47
    %49 = vmax.xlane.f32.xlu0 %v36
    %v50 = vpop.xlane.xlu0 %49
    %51 = vmax.xlane.f32.xlu0 %v37
    %v52 = vpop.xlane.xlu0 %51
    %53 = vmax.xlane.f32.xlu0 %v38
    %v54 = vpop.xlane.xlu0 %53
    %55 = vadd.xlane.f32.xlu0 %v31
    %v56 = vpop.xlane.xlu0 %55
    %57 = vadd.xlane.f32.xlu0 %v32
    %v58 = vpop.xlane.xlu0 %57
    %59 = vadd.xlane.f32.xlu0 %v33
    %v60 = vpop.xlane.xlu0 %59
    %61 = vadd.xlane.f32.xlu0 %v34
    %v62 = vpop.xlane.xlu0 %61
    %63 = vadd.xlane.f32.xlu0 %v35
    %v64 = vpop.xlane.xlu0 %63
    %65 = vadd.xlane.f32.xlu0 %v36
    %v66 = vpop.xlane.xlu0 %65
    %67 = vadd.xlane.f32.xlu0 %v37
    %v68 = vpop.xlane.xlu0 %67
    %69 = vadd.xlane.f32.xlu0 %v38
    %v70 = vpop.xlane.xlu0 %69
    %v71 = vrcp.pop 128.0
    %v72 = vmul.f32 128.0, %v71
    %v73 = vsub.f32 1.0, %v72
    %v74 = vmul.f32 %v71, %v73
    %v75 = vadd.f32 %v71, %v74
    %vm76 = vweird.f32 %v71
    %v77 = vsel %vm76, %v71, %v75
    %v78 = vmul.f32 %v56, %v77
    %v79 = vmul.f32 %v58, %v77
    %v80 = vmul.f32 %v60, %v77
    %v81 = vmul.f32 %v62, %v77
    %v82 = vmul.f32 %v64, %v77
    %v83 = vmul.f32 %v66, %v77
    %v84 = vmul.f32 %v68, %v77
    %v85 = vmul.f32 %v70, %v77
    %v86 = vlaneseq
    %v87 = vand.u32 %v86, 127
    %vm88 = vcmp.eq.s32.totalorder %v87, 0
    %v89 = vsel %vm88, %v40, %v78
    %v90 = vsel %vm88, %v42, %v79
    %v91 = vsel %vm88, %v44, %v80
    %v92 = vsel %vm88, %v46, %v81
    %v93 = vsel %vm88, %v48, %v82
    %v94 = vsel %vm88, %v50, %v83
    %v95 = vsel %vm88, %v52, %v84
    %v96 = vsel %vm88, %v54, %v85
    %v97 = vld [vmem:[%s1] sm:$0xff]
    %v98 = vld [vmem:[%s1 + $0x8] sm:$0xff]
    %v99 = vld [vmem:[%s1 + $0x10] sm:$0xff]
    %v100 = vld [vmem:[%s1 + $0x18] sm:$0xff]
    %v101 = vld [vmem:[%s1 + $0x20] sm:$0xff]
    %v102 = vld [vmem:[%s1 + $0x28] sm:$0xff]
    %v103 = vld [vmem:[%s1 + $0x30] sm:$0xff]
    %v104 = vld [vmem:[%s1 + $0x38] sm:$0xff]
    %v105 = vld [vmem:[%s2] sm:$0xff]
    %v106 = vld [vmem:[%s2 + $0x8] sm:$0xff]
    %v107 = vld [vmem:[%s2 + $0x10] sm:$0xff]
    %v108 = vld [vmem:[%s2 + $0x18] sm:$0xff]
    %v109 = vld [vmem:[%s2 + $0x20] sm:$0xff]
    %v110 = vld [vmem:[%s2 + $0x28] sm:$0xff]
    %v111 = vld [vmem:[%s2 + $0x30] sm:$0xff]
    %v112 = vld [vmem:[%s2 + $0x38] sm:$0xff]
    %114 = vset.pattern.permute.xlu0 0
    %115 = vperm.xlu0 %114, %v97
    %v116 = vpop.permute.xlu0 %115
    %119 = vset.pattern.permute.xlu0 0
    %120 = vperm.xlu0 %119, %v98
    %v121 = vpop.permute.xlu0 %120
    %124 = vset.pattern.permute.xlu0 0
    %125 = vperm.xlu0 %124, %v99
    %v126 = vpop.permute.xlu0 %125
    %129 = vset.pattern.permute.xlu0 0
    %130 = vperm.xlu0 %129, %v100
    %v131 = vpop.permute.xlu0 %130
    %v133 = vmul.f32 %v116, %v89
    %v134 = vmul.f32 %v121, %v90
    %v135 = vmul.f32 %v126, %v91
    %v136 = vmul.f32 %v131, %v92
    %v137 = vmul.f32 %v116, %v93
    %v138 = vmul.f32 %v121, %v94
    %v139 = vmul.f32 %v126, %v95
    %v140 = vmul.f32 %v131, %v96
    %vm141 = vcmask 15360
    %v142 = vsel %vm141, %v133, 0.0
    %v143 = vsel %vm141, %v134, 0.0
    %v144 = vadd.f32 %v142, %v143
    %v145 = vsel %vm141, %v135, 0.0
    %v146 = vadd.f32 %v144, %v145
    %v147 = vsel %vm141, %v136, 0.0
    %v148 = vadd.f32 %v146, %v147
    %v149 = vrot.slane %v148, 4
    %v150 = vadd.f32 %v148, %v149
    %v151 = vrot.slane %v150, 2
    %v152 = vadd.f32 %v150, %v151
    %v153 = vrot.slane %v152, 1
    %v154 = vadd.f32 %v152, %v153
    %v155 = vsel %vm141, %v137, 0.0
    %v156 = vsel %vm141, %v138, 0.0
    %v157 = vadd.f32 %v155, %v156
    %v158 = vsel %vm141, %v139, 0.0
    %v159 = vadd.f32 %v157, %v158
    %v160 = vsel %vm141, %v140, 0.0
    %v161 = vadd.f32 %v159, %v160
    %v162 = vrot.slane %v161, 4
    %v163 = vadd.f32 %v161, %v162
    %v164 = vrot.slane %v163, 2
    %v165 = vadd.f32 %v163, %v164
    %v166 = vrot.slane %v165, 1
    %v167 = vadd.f32 %v165, %v166
    %v168 = vmax.f32 %v154, 0.0
    %v169 = vmax.f32 %v167, 0.0
    %v170 = vsel %vm141, %v168, 0.0
    %171 = vadd.xlane.f32.xlu0 %v170
    %v172 = vpop.xlane.xlu0 %171
    %v173 = vsel %vm141, %v169, 0.0
    %174 = vadd.xlane.f32.xlu0 %v173
    %v175 = vpop.xlane.xlu0 %174
    %v176 = vmul.f32 %v105, %v172
    %v177 = vmul.f32 %v106, %v172
    %v178 = vmul.f32 %v107, %v172
    %v179 = vmul.f32 %v108, %v172
    %v180 = vmul.f32 %v105, %v175
    %v181 = vmul.f32 %v106, %v175
    %v182 = vmul.f32 %v107, %v175
    %v183 = vmul.f32 %v108, %v175
    %v184 = vadd.f32 %v176, 0.0
    %v185 = vadd.f32 %v177, 0.0
    %v186 = vadd.f32 %v178, 0.0
    %v187 = vadd.f32 %v179, 0.0
    %v188 = vadd.f32 %v180, 0.0
    %v189 = vadd.f32 %v181, 0.0
    %v190 = vadd.f32 %v182, 0.0
    %v191 = vadd.f32 %v183, 0.0
    %193 = vset.pattern.permute.xlu0 0
    %194 = vperm.xlu0 %193, %v101
    %v195 = vpop.permute.xlu0 %194
    %198 = vset.pattern.permute.xlu0 0
    %199 = vperm.xlu0 %198, %v102
    %v200 = vpop.permute.xlu0 %199
    %203 = vset.pattern.permute.xlu0 0
    %204 = vperm.xlu0 %203, %v103
    %v205 = vpop.permute.xlu0 %204
    %208 = vset.pattern.permute.xlu0 0
    %209 = vperm.xlu0 %208, %v104
    %v210 = vpop.permute.xlu0 %209
    %v212 = vmul.f32 %v195, %v89
    %v213 = vmul.f32 %v200, %v90
    %v214 = vmul.f32 %v205, %v91
    %v215 = vmul.f32 %v210, %v92
    %v216 = vmul.f32 %v195, %v93
    %v217 = vmul.f32 %v200, %v94
    %v218 = vmul.f32 %v205, %v95
    %v219 = vmul.f32 %v210, %v96
    %v220 = vsel %vm141, %v212, 0.0
    %v221 = vsel %vm141, %v213, 0.0
    %v222 = vadd.f32 %v220, %v221
    %v223 = vsel %vm141, %v214, 0.0
    %v224 = vadd.f32 %v222, %v223
    %v225 = vsel %vm141, %v215, 0.0
    %v226 = vadd.f32 %v224, %v225
    %v227 = vrot.slane %v226, 4
    %v228 = vadd.f32 %v226, %v227
    %v229 = vrot.slane %v228, 2
    %v230 = vadd.f32 %v228, %v229
    %v231 = vrot.slane %v230, 1
    %v232 = vadd.f32 %v230, %v231
    %v233 = vsel %vm141, %v216, 0.0
    %v234 = vsel %vm141, %v217, 0.0
    %v235 = vadd.f32 %v233, %v234
    %v236 = vsel %vm141, %v218, 0.0
    %v237 = vadd.f32 %v235, %v236
    %v238 = vsel %vm141, %v219, 0.0
    %v239 = vadd.f32 %v237, %v238
    %v240 = vrot.slane %v239, 4
    %v241 = vadd.f32 %v239, %v240
    %v242 = vrot.slane %v241, 2
    %v243 = vadd.f32 %v241, %v242
    %v244 = vrot.slane %v243, 1
    %v245 = vadd.f32 %v243, %v244
    %v246 = vmax.f32 %v232, 0.0
    %v247 = vmax.f32 %v245, 0.0
    %v248 = vsel %vm141, %v246, 0.0
    %249 = vadd.xlane.f32.xlu0 %v248
    %v250 = vpop.xlane.xlu0 %249
    %v251 = vsel %vm141, %v247, 0.0
    %252 = vadd.xlane.f32.xlu0 %v251
    %v253 = vpop.xlane.xlu0 %252
    %v254 = vmul.f32 %v109, %v250
    %v255 = vmul.f32 %v110, %v250
    %v256 = vmul.f32 %v111, %v250
    %v257 = vmul.f32 %v112, %v250
    %v258 = vmul.f32 %v109, %v253
    %v259 = vmul.f32 %v110, %v253
    %v260 = vmul.f32 %v111, %v253
    %v261 = vmul.f32 %v112, %v253
    %v262 = vadd.f32 %v184, %v254
    %v263 = vadd.f32 %v185, %v255
    %v264 = vadd.f32 %v186, %v256
    %v265 = vadd.f32 %v187, %v257
    %v266 = vadd.f32 %v188, %v258
    %v267 = vadd.f32 %v189, %v259
    %v268 = vadd.f32 %v190, %v260
    %v269 = vadd.f32 %v191, %v261
    %v270 = vxor.u32 %v262, 2147483648
    %v271 = vxor.u32 %v263, 2147483648
    %v272 = vxor.u32 %v264, 2147483648
    %v273 = vxor.u32 %v265, 2147483648
    %v274 = vxor.u32 %v266, 2147483648
    %v275 = vxor.u32 %v267, 2147483648
    %v276 = vxor.u32 %v268, 2147483648
    %v277 = vxor.u32 %v269, 2147483648
    %v278 = vmul.f32 %v270, 1.442695
    %v279 = vpow.pop %v278
    %v280 = vmul.f32 %v271, 1.442695
    %v281 = vpow.pop %v280
    %v282 = vmul.f32 %v272, 1.442695
    %v283 = vpow.pop %v282
    %v284 = vmul.f32 %v273, 1.442695
    %v285 = vpow.pop %v284
    %v286 = vmul.f32 %v274, 1.442695
    %v287 = vpow.pop %v286
    %v288 = vmul.f32 %v275, 1.442695
    %v289 = vpow.pop %v288
    %v290 = vmul.f32 %v276, 1.442695
    %v291 = vpow.pop %v290
    %v292 = vmul.f32 %v277, 1.442695
    %v293 = vpow.pop %v292
    %v294 = vadd.f32 %v279, 1.0
    %v295 = vadd.f32 %v281, 1.0
    %v296 = vadd.f32 %v283, 1.0
    %v297 = vadd.f32 %v285, 1.0
    %v298 = vadd.f32 %v287, 1.0
    %v299 = vadd.f32 %v289, 1.0
    %v300 = vadd.f32 %v291, 1.0
    %v301 = vadd.f32 %v293, 1.0
    %v302 = vrcp.pop %v294
    %v303 = vmul.f32 %v294, %v302
    %v304 = vsub.f32 1.0, %v303
    %v305 = vmul.f32 %v302, %v304
    %v306 = vadd.f32 %v302, %v305
    %vm307 = vweird.f32 %v294
    %vm308 = vweird.f32 %v302
    %vm309 = vmor %vm307, %vm308
    %v310 = vsel %vm309, %v302, %v306
    %v311 = vand.u32 2147483647, %v294
    %vm312 = vcmp.eq.f32.partialorder %v311, 8.507059e+37
    %v313 = vand.u32 %v294, 2147483648
    %v314 = vor.u32 1.1754944e-38, %v313
    %v315 = vsel %vm312, %v314, %v310
    %v316 = vmul.f32 1.0, %v315
    %v317 = vrcp.pop %v295
    %v318 = vmul.f32 %v295, %v317
    %v319 = vsub.f32 1.0, %v318
    %v320 = vmul.f32 %v317, %v319
    %v321 = vadd.f32 %v317, %v320
    %vm322 = vweird.f32 %v295
    %vm323 = vweird.f32 %v317
    %vm324 = vmor %vm322, %vm323
    %v325 = vsel %vm324, %v317, %v321
    %v326 = vand.u32 2147483647, %v295
    %vm327 = vcmp.eq.f32.partialorder %v326, 8.507059e+37
    %v328 = vand.u32 %v295, 2147483648
    %v329 = vor.u32 1.1754944e-38, %v328
    %v330 = vsel %vm327, %v329, %v325
    %v331 = vmul.f32 1.0, %v330
    %v332 = vrcp.pop %v296
    %v333 = vmul.f32 %v296, %v332
    %v334 = vsub.f32 1.0, %v333
    %v335 = vmul.f32 %v332, %v334
    %v336 = vadd.f32 %v332, %v335
    %vm337 = vweird.f32 %v296
    %vm338 = vweird.f32 %v332
    %vm339 = vmor %vm337, %vm338
    %v340 = vsel %vm339, %v332, %v336
    %v341 = vand.u32 2147483647, %v296
    %vm342 = vcmp.eq.f32.partialorder %v341, 8.507059e+37
    %v343 = vand.u32 %v296, 2147483648
    %v344 = vor.u32 1.1754944e-38, %v343
    %v345 = vsel %vm342, %v344, %v340
    %v346 = vmul.f32 1.0, %v345
    %v347 = vrcp.pop %v297
    %v348 = vmul.f32 %v297, %v347
    %v349 = vsub.f32 1.0, %v348
    %v350 = vmul.f32 %v347, %v349
    %v351 = vadd.f32 %v347, %v350
    %vm352 = vweird.f32 %v297
    %vm353 = vweird.f32 %v347
    %vm354 = vmor %vm352, %vm353
    %v355 = vsel %vm354, %v347, %v351
    %v356 = vand.u32 2147483647, %v297
    %vm357 = vcmp.eq.f32.partialorder %v356, 8.507059e+37
    %v358 = vand.u32 %v297, 2147483648
    %v359 = vor.u32 1.1754944e-38, %v358
    %v360 = vsel %vm357, %v359, %v355
    %v361 = vmul.f32 1.0, %v360
    %v362 = vrcp.pop %v298
    %v363 = vmul.f32 %v298, %v362
    %v364 = vsub.f32 1.0, %v363
    %v365 = vmul.f32 %v362, %v364
    %v366 = vadd.f32 %v362, %v365
    %vm367 = vweird.f32 %v298
    %vm368 = vweird.f32 %v362
    %vm369 = vmor %vm367, %vm368
    %v370 = vsel %vm369, %v362, %v366
    %v371 = vand.u32 2147483647, %v298
    %vm372 = vcmp.eq.f32.partialorder %v371, 8.507059e+37
    %v373 = vand.u32 %v298, 2147483648
    %v374 = vor.u32 1.1754944e-38, %v373
    %v375 = vsel %vm372, %v374, %v370
    %v376 = vmul.f32 1.0, %v375
    %v377 = vrcp.pop %v299
    %v378 = vmul.f32 %v299, %v377
    %v379 = vsub.f32 1.0, %v378
    %v380 = vmul.f32 %v377, %v379
    %v381 = vadd.f32 %v377, %v380
    %vm382 = vweird.f32 %v299
    %vm383 = vweird.f32 %v377
    %vm384 = vmor %vm382, %vm383
    %v385 = vsel %vm384, %v377, %v381
    %v386 = vand.u32 2147483647, %v299
    %vm387 = vcmp.eq.f32.partialorder %v386, 8.507059e+37
    %v388 = vand.u32 %v299, 2147483648
    %v389 = vor.u32 1.1754944e-38, %v388
    %v390 = vsel %vm387, %v389, %v385
    %v391 = vmul.f32 1.0, %v390
    %v392 = vrcp.pop %v300
    %v393 = vmul.f32 %v300, %v392
    %v394 = vsub.f32 1.0, %v393
    %v395 = vmul.f32 %v392, %v394
    %v396 = vadd.f32 %v392, %v395
    %vm397 = vweird.f32 %v300
    %vm398 = vweird.f32 %v392
    %vm399 = vmor %vm397, %vm398
    %v400 = vsel %vm399, %v392, %v396
    %v401 = vand.u32 2147483647, %v300
    %vm402 = vcmp.eq.f32.partialorder %v401, 8.507059e+37
    %v403 = vand.u32 %v300, 2147483648
    %v404 = vor.u32 1.1754944e-38, %v403
    %v405 = vsel %vm402, %v404, %v400
    %v406 = vmul.f32 1.0, %v405
    %v407 = vrcp.pop %v301
    %v408 = vmul.f32 %v301, %v407
    %v409 = vsub.f32 1.0, %v408
    %v410 = vmul.f32 %v407, %v409
    %v411 = vadd.f32 %v407, %v410
    %vm412 = vweird.f32 %v301
    %vm413 = vweird.f32 %v407
    %vm414 = vmor %vm412, %vm413
    %v415 = vsel %vm414, %v407, %v411
    %v416 = vand.u32 2147483647, %v301
    %vm417 = vcmp.eq.f32.partialorder %v416, 8.507059e+37
    %v418 = vand.u32 %v301, 2147483648
    %v419 = vor.u32 1.1754944e-38, %v418
    %v420 = vsel %vm417, %v419, %v415
    %v421 = vmul.f32 1.0, %v420
    %423 = vset.pattern.permute.xlu0 0
    %424 = vperm.xlu0 %423, %v316
    %v425 = vpop.permute.xlu0 %424
    %428 = vset.pattern.permute.xlu0 0
    %429 = vperm.xlu0 %428, %v331
    %v430 = vpop.permute.xlu0 %429
    %433 = vset.pattern.permute.xlu0 0
    %434 = vperm.xlu0 %433, %v346
    %v435 = vpop.permute.xlu0 %434
    %438 = vset.pattern.permute.xlu0 0
    %439 = vperm.xlu0 %438, %v361
    %v440 = vpop.permute.xlu0 %439
    %443 = vset.pattern.permute.xlu0 0
    %444 = vperm.xlu0 %443, %v376
    %v445 = vpop.permute.xlu0 %444
    %448 = vset.pattern.permute.xlu0 0
    %449 = vperm.xlu0 %448, %v391
    %v450 = vpop.permute.xlu0 %449
    %453 = vset.pattern.permute.xlu0 0
    %454 = vperm.xlu0 %453, %v406
    %v455 = vpop.permute.xlu0 %454
    %458 = vset.pattern.permute.xlu0 0
    %459 = vperm.xlu0 %458, %v421
    %v460 = vpop.permute.xlu0 %459
    %v462 = vmul.f32 %v425, %v31
    %v463 = vmul.f32 %v430, %v32
    %v464 = vmul.f32 %v435, %v33
    %v465 = vmul.f32 %v440, %v34
    %v466 = vmul.f32 %v445, %v35
    %v467 = vmul.f32 %v450, %v36
    %v468 = vmul.f32 %v455, %v37
    %v469 = vmul.f32 %v460, %v38
    %v470 = vmax.f32 %v462, %v464
    %v471 = vmax.f32 %v463, %v465
    %v472 = vmax.f32 %v470, %v471
    %v473 = vrot.slane %v472, 4
    %v474 = vmax.f32 %v472, %v473
    %v475 = vrot.slane %v474, 2
    %v476 = vmax.f32 %v474, %v475
    %v477 = vrot.slane %v476, 1
    %v478 = vmax.f32 %v476, %v477
    %v479 = vmax.f32 %v466, %v468
    %v480 = vmax.f32 %v467, %v469
    %v481 = vmax.f32 %v479, %v480
    %v482 = vrot.slane %v481, 4
    %v483 = vmax.f32 %v481, %v482
    %v484 = vrot.slane %v483, 2
    %v485 = vmax.f32 %v483, %v484
    %v486 = vrot.slane %v485, 1
    %v487 = vmax.f32 %v485, %v486
    %v488 = vadd.f32 %v462, %v463
    %v489 = vadd.f32 %v488, %v464
    %v490 = vadd.f32 %v489, %v465
    %v491 = vrot.slane %v490, 4
    %v492 = vadd.f32 %v490, %v491
    %v493 = vrot.slane %v492, 2
    %v494 = vadd.f32 %v492, %v493
    %v495 = vrot.slane %v494, 1
    %v496 = vadd.f32 %v494, %v495
    %v497 = vadd.f32 %v466, %v467
    %v498 = vadd.f32 %v497, %v468
    %v499 = vadd.f32 %v498, %v469
    %v500 = vrot.slane %v499, 4
    %v501 = vadd.f32 %v499, %v500
    %v502 = vrot.slane %v501, 2
    %v503 = vadd.f32 %v501, %v502
    %v504 = vrot.slane %v503, 1
    %v505 = vadd.f32 %v503, %v504
    %v506 = vrcp.pop 32.0
    %v507 = vmul.f32 32.0, %v506
    %v508 = vsub.f32 1.0, %v507
    %v509 = vmul.f32 %v506, %v508
    %v510 = vadd.f32 %v506, %v509
    %vm511 = vweird.f32 %v506
    %v512 = vsel %vm511, %v506, %v510
    %v513 = vmul.f32 %v496, %v512
    %v514 = vmul.f32 %v505, %v512
    %v515 = vlaneseq
    %v516 = vshrl.u32 %v515, 7
    %vm517 = vcmp.eq.s32.totalorder %v516, 0
    %v518 = vsel %vm517, %v478, %v513
    %v519 = vsel %vm517, %v487, %v514
    %520 = vrot.lane.b32.xlu0 %v518, 4
    %v521 = vpop.permute.xlu0 %520
    %522 = vrot.lane.b32.xlu0 %v519, 4
    %v523 = vpop.permute.xlu0 %522
    %s524 = sld [smem:[#allocation2]]
    %s525 = sld [smem:[#allocation2 + $0x80]]
    %v526 = vstv %s524
    %v527 = vstv %s525
    %v528 = vsel %vm517, %v526, %v527
    %v529 = vmul.f32 %v528, %v521
    %v530 = vmul.f32 %v528, %v523
    %vm531 = vcmp.ge.s32.totalorder %v87, 4
    %v532 = vsel %vm531, %v529, 0.0
    %v533 = vsel %vm531, %v530, 0.0
    %v534 = vadd.f32 %v532, 0.0
    %v535 = vadd.f32 %v533, 0.0
    %536 = vrot.lane.b32.xlu0 %v518, 3
    %v537 = vpop.permute.xlu0 %536
    %538 = vrot.lane.b32.xlu0 %v519, 3
    %v539 = vpop.permute.xlu0 %538
    %s540 = sld [smem:[#allocation2 + $0x1]]
    %s541 = sld [smem:[#allocation2 + $0x81]]
    %v542 = vstv %s540
    %v543 = vstv %s541
    %v544 = vsel %vm517, %v542, %v543
    %v545 = vmul.f32 %v544, %v537
    %v546 = vmul.f32 %v544, %v539
    %vm547 = vcmp.ge.s32.totalorder %v87, 3
    %v548 = vsel %vm547, %v545, 0.0
    %v549 = vsel %vm547, %v546, 0.0
    %v550 = vadd.f32 %v534, %v548
    %v551 = vadd.f32 %v535, %v549
    %552 = vrot.lane.b32.xlu0 %v518, 2
    %v553 = vpop.permute.xlu0 %552
    %554 = vrot.lane.b32.xlu0 %v519, 2
    %v555 = vpop.permute.xlu0 %554
    %s556 = sld [smem:[#allocation2 + $0x2]]
    %s557 = sld [smem:[#allocation2 + $0x82]]
    %v558 = vstv %s556
    %v559 = vstv %s557
    %v560 = vsel %vm517, %v558, %v559
    %v561 = vmul.f32 %v560, %v553
    %v562 = vmul.f32 %v560, %v555
    %vm563 = vcmp.ge.s32.totalorder %v87, 2
    %v564 = vsel %vm563, %v561, 0.0
    %v565 = vsel %vm563, %v562, 0.0
    %v566 = vadd.f32 %v550, %v564
    %v567 = vadd.f32 %v551, %v565
    %568 = vrot.lane.b32.xlu0 %v518, 1
    %v569 = vpop.permute.xlu0 %568
    %570 = vrot.lane.b32.xlu0 %v519, 1
    %v571 = vpop.permute.xlu0 %570
    %s572 = sld [smem:[#allocation2 + $0x3]]
    %s573 = sld [smem:[#allocation2 + $0x83]]
    %v574 = vstv %s572
    %v575 = vstv %s573
    %v576 = vsel %vm517, %v574, %v575
    %v577 = vmul.f32 %v576, %v569
    %v578 = vmul.f32 %v576, %v571
    %vm579 = vcmp.ge.s32.totalorder %v87, 1
    %v580 = vsel %vm579, %v577, 0.0
    %v581 = vsel %vm579, %v578, 0.0
    %v582 = vadd.f32 %v566, %v580
    %v583 = vadd.f32 %v567, %v581
    %s584 = sld [smem:[#allocation2 + $0x4]]
    %s585 = sld [smem:[#allocation2 + $0x84]]
    %v586 = vstv %s584
    %v587 = vstv %s585
    %v588 = vsel %vm517, %v586, %v587
    %v589 = vmul.f32 %v588, %v518
    %v590 = vmul.f32 %v588, %v519
    %v591 = vadd.f32 %v582, %v589
    %v592 = vadd.f32 %v583, %v590
    %593 = vrot.lane.b32.xlu0 %v518, 127
    %v594 = vpop.permute.xlu0 %593
    %595 = vrot.lane.b32.xlu0 %v519, 127
    %v596 = vpop.permute.xlu0 %595
    %s597 = sld [smem:[#allocation2 + $0x5]]
    %s598 = sld [smem:[#allocation2 + $0x85]]
    %v599 = vstv %s597
    %v600 = vstv %s598
    %v601 = vsel %vm517, %v599, %v600
    %v602 = vmul.f32 %v601, %v594
    %v603 = vmul.f32 %v601, %v596
    %vm604 = vcmp.lt.s32.totalorder %v87, 127
    %v605 = vsel %vm604, %v602, 0.0
    %v606 = vsel %vm604, %v603, 0.0
    %v607 = vadd.f32 %v591, %v605
    %v608 = vadd.f32 %v592, %v606
    %609 = vrot.lane.b32.xlu0 %v518, 126
    %v610 = vpop.permute.xlu0 %609
    %611 = vrot.lane.b32.xlu0 %v519, 126
    %v612 = vpop.permute.xlu0 %611
    %s613 = sld [smem:[#allocation2 + $0x6]]
    %s614 = sld [smem:[#allocation2 + $0x86]]
    %v615 = vstv %s613
    %v616 = vstv %s614
    %v617 = vsel %vm517, %v615, %v616
    %v618 = vmul.f32 %v617, %v610
    %v619 = vmul.f32 %v617, %v612
    %vm620 = vcmp.lt.s32.totalorder %v87, 126
    %v621 = vsel %vm620, %v618, 0.0
    %v622 = vsel %vm620, %v619, 0.0
    %v623 = vadd.f32 %v607, %v621
    %v624 = vadd.f32 %v608, %v622
    %625 = vrot.lane.b32.xlu0 %v518, 125
    %v626 = vpop.permute.xlu0 %625
    %627 = vrot.lane.b32.xlu0 %v519, 125
    %v628 = vpop.permute.xlu0 %627
    %s629 = sld [smem:[#allocation2 + $0x7]]
    %s630 = sld [smem:[#allocation2 + $0x87]]
    %v631 = vstv %s629
    %v632 = vstv %s630
    %v633 = vsel %vm517, %v631, %v632
    %v634 = vmul.f32 %v633, %v626
    %v635 = vmul.f32 %v633, %v628
    %vm636 = vcmp.lt.s32.totalorder %v87, 125
    %v637 = vsel %vm636, %v634, 0.0
    %v638 = vsel %vm636, %v635, 0.0
    %v639 = vadd.f32 %v623, %v637
    %v640 = vadd.f32 %v624, %v638
    %641 = vrot.lane.b32.xlu0 %v518, 124
    %v642 = vpop.permute.xlu0 %641
    %643 = vrot.lane.b32.xlu0 %v519, 124
    %v644 = vpop.permute.xlu0 %643
    %s645 = sld [smem:[#allocation2 + $0x8]]
    %s646 = sld [smem:[#allocation2 + $0x88]]
    %v647 = vstv %s645
    %v648 = vstv %s646
    %v649 = vsel %vm517, %v647, %v648
    %v650 = vmul.f32 %v649, %v642
    %v651 = vmul.f32 %v649, %v644
    %vm652 = vcmp.lt.s32.totalorder %v87, 124
    %v653 = vsel %vm652, %v650, 0.0
    %v654 = vsel %vm652, %v651, 0.0
    %v655 = vadd.f32 %v639, %v653
    %v656 = vadd.f32 %v640, %v654
    %vm657 = vcmask 1041408
    %v658 = vsel %vm657, %v655, 0.0
    %v659 = vrot.slane %v658, 4
    %v660 = vadd.f32 %v658, %v659
    %v661 = vrot.slane %v660, 2
    %v662 = vadd.f32 %v660, %v661
    %v663 = vrot.slane %v662, 1
    %v664 = vadd.f32 %v662, %v663
    %v665 = vsel %vm657, %v656, 0.0
    %v666 = vrot.slane %v665, 4
    %v667 = vadd.f32 %v665, %v666
    %v668 = vrot.slane %v667, 2
    %v669 = vadd.f32 %v667, %v668
    %v670 = vrot.slane %v669, 1
    %v671 = vadd.f32 %v669, %v670
    %v672 = vxor.u32 %v664, 2147483648
    %v673 = vxor.u32 %v671, 2147483648
    %v674 = vmul.f32 %v672, 1.442695
    %v675 = vpow.pop %v674
    %v676 = vmul.f32 %v673, 1.442695
    %v677 = vpow.pop %v676
    %v678 = vadd.f32 %v675, 1.0
    %v679 = vadd.f32 %v677, 1.0
    %v680 = vrcp.pop %v678
    %v681 = vmul.f32 %v678, %v680
    %v682 = vsub.f32 1.0, %v681
    %v683 = vmul.f32 %v680, %v682
    %v684 = vadd.f32 %v680, %v683
    %vm685 = vweird.f32 %v678
    %vm686 = vweird.f32 %v680
    %vm687 = vmor %vm685, %vm686
    %v688 = vsel %vm687, %v680, %v684
    %v689 = vand.u32 2147483647, %v678
    %vm690 = vcmp.eq.f32.partialorder %v689, 8.507059e+37
    %v691 = vand.u32 %v678, 2147483648
    %v692 = vor.u32 1.1754944e-38, %v691
    %v693 = vsel %vm690, %v692, %v688
    %v694 = vmul.f32 1.0, %v693
    %v695 = vrcp.pop %v679
    %v696 = vmul.f32 %v679, %v695
    %v697 = vsub.f32 1.0, %v696
    %v698 = vmul.f32 %v695, %v697
    %v699 = vadd.f32 %v695, %v698
    %vm700 = vweird.f32 %v679
    %vm701 = vweird.f32 %v695
    %vm702 = vmor %vm700, %vm701
    %v703 = vsel %vm702, %v695, %v699
    %v704 = vand.u32 2147483647, %v679
    %vm705 = vcmp.eq.f32.partialorder %v704, 8.507059e+37
    %v706 = vand.u32 %v679, 2147483648
    %v707 = vor.u32 1.1754944e-38, %v706
    %v708 = vsel %vm705, %v707, %v703
    %v709 = vmul.f32 1.0, %v708
    %v710 = vmul.f32 %v694, %v462
    %v711 = vmul.f32 %v694, %v463
    %v712 = vmul.f32 %v694, %v464
    %v713 = vmul.f32 %v694, %v465
    %v714 = vmul.f32 %v709, %v466
    %v715 = vmul.f32 %v709, %v467
    %v716 = vmul.f32 %v709, %v468
    %v717 = vmul.f32 %v709, %v469
    %718 = vst [vmem:[#allocation5] sm:$0xff] %v710
    %719 = vst [vmem:[#allocation5 + $0x8] sm:$0xff] %v711
    %720 = vst [vmem:[#allocation5 + $0x10] sm:$0xff] %v712
    %721 = vst [vmem:[#allocation5 + $0x18] sm:$0xff] %v713
    %722 = vst [vmem:[#allocation5 + $0x20] sm:$0xff] %v714
    %723 = vst [vmem:[#allocation5 + $0x28] sm:$0xff] %v715
    %724 = vst [vmem:[#allocation5 + $0x30] sm:$0xff] %v716
    %725 = vst [vmem:[#allocation5 + $0x38] sm:$0xff] %v717
    // Predicated region
    $region22: #{tpu_custom_call.1} parent=1 // pred_check
      _
    $region23: #{tpu_custom_call.1} parent=1 // pred_check_branch
      %727 = sbr.rel (0) target = $region25
    $region24: #{tpu_custom_call.1} parent=1 // pred_region
      %729 = vsyncadd [#allocation3], 0
      %s730 = sshll.u32 [#allocation5], 4
      %s731 = int_to_ptr.vmem [resolvable:$true] %s730
      %s732 = sshll.u32 %s4, 4
      %s733 = int_to_ptr.hbm [resolvable:$true] %s732
      %738 = dma.vmem_to_hbm [thread:$0]  %s731, 1024, %s733, [#allocation3], 128, 128, 8
    $region25: #{tpu_custom_call.1} parent=1 // pred_fallthru
      _
    // Predicated region
    $region26: #{tpu_custom_call.1} parent=1 // pred_check
      _
    $region27: #{tpu_custom_call.1} parent=1 // pred_check_branch
      %740 = sbr.rel (0) target = $region29
    $region28: #{tpu_custom_call.1} parent=1 // pred_region
      %742 = dma.done [#allocation3], 1024
    $region29: #{tpu_custom_call.1} parent=1 // pred_fallthru
      _
    %743 = vsyncpa [#allocation3], 1
    %744 = vsyncpa [#allocation4], 1

</llo_original>
